<compile_context>
chip_gen: v7x
topology: tpu7x:2x2x1
jax: 0.10.0
libtpu: 0.0.40
codegen_flags: <defaults>
</compile_context>

<pallas_src>
import functools
import math

import jax
import jax.numpy as jnp
import numpy as np
from jax import lax
from jax.experimental import pallas as pl
from jax.experimental.pallas import tpu as pltpu

_DEFAULT_STD_EPSILON = 1e-8
_LANE = 128
_SUBLANE = 8


# ---------------------------------------------------------------------------
# Layout / tiling helpers
# ---------------------------------------------------------------------------
def _round_up(n, m):
    return ((n + m - 1) // m) * m


def _fold_group(feature_size):
    """Smallest g such that g * feature_size is a multiple of 128 lanes."""
    if feature_size % _LANE == 0:
        return 1
    return _LANE // math.gcd(feature_size, _LANE)


def _vmem_limit_bytes():
    """Per-generation scoped-VMEM request (leaves headroom for the compiler)."""
    try:
        cap = pltpu.get_tpu_info().vmem_capacity_bytes
    except Exception:
        cap = 64 * 1024 * 1024          # conservative fallback = v7x-sized VMEM
    # ~75% of physical: ~48 MiB on v7x (64 MiB), 96 MiB on v5e/v6e (128 MiB).
    return min((cap * 3) // 4, 96 * 1024 * 1024)


def _pick_chunk(kf):
    """Node-axis chunk for the in-kernel streaming reduction (sublane aligned).

    Returns None when Kf is too small / not 8-aligned -> whole-tile fallback.
    """
    for c in (32, 16, 8):
        if kf % c == 0 and kf // c >= 2:
            return c
    return None


def _pick_batch_tile(batch, row_live_bytes, cap_bytes, target_bytes=6 << 20):
    """Batch rows per fused grid step.

    Hard constraints: divisor of `batch`, sublane aligned (Bt % 8 == 0) or the
    full batch, and the estimated live VMEM fits `cap_bytes`.  Among legal
    tiles prefer the smallest one that still reaches ~6 MiB live per step
    (big enough to sit near the HBM roofline, small enough to keep multiple
    grid steps for pipelining / v7x's two TensorCores).  Returns None if
    nothing legal fits -> caller uses the K-tiled two-phase path.
    """
    cands = [d for d in range(1, batch + 1)
             if batch % d == 0 and (d % _SUBLANE == 0 or d == batch)
             and d * row_live_bytes <= cap_bytes]
    if not cands:
        return None
    reach = [d for d in cands if d * row_live_bytes >= target_bytes]
    return min(reach) if reach else max(cands)


def _pick_batch_tile_two_phase(batch):
    """Smallest sublane-aligned divisor of batch (or the full batch)."""
    d = _SUBLANE
    while d <= batch:
        if batch % d == 0:
            return d
        d += _SUBLANE
    return batch


def _pick_k_tile(kf, live_per_row_bytes, cap_bytes):
    """Largest sublane-aligned divisor of kf whose live VMEM fits cap_bytes."""
    max_rows = max(_SUBLANE, cap_bytes // max(live_per_row_bytes, 1))
    best = _SUBLANE
    d = _SUBLANE
    while d <= kf:
        if kf % d == 0 and d <= max_rows:
            best = d
        d += _SUBLANE
    return min(best, kf)


# ---------------------------------------------------------------------------
# In-kernel helpers
# ---------------------------------------------------------------------------
def _combine_fold_groups(arr, g, f):
    """(rows, g*f) -> (rows, f): sum the g interleaved lane groups (g static,
    combined once per block so the per-step epilogue stays clean)."""
    out = arr[:, 0:f]
    for r in range(1, g):
        out = out + arr[:, r * f:(r + 1) * f]
    return out


def _tile_fold_groups(arr, g):
    """(rows, f) -> (rows, g*f): replicate stats across the folded lane groups."""
    return arr if g == 1 else jnp.tile(arr, (1, g))


def _stats_from_sums(new_sum, new_sq, count, std_epsilon):
    """mean and 1/std.  Torch parity: std = sqrt(E[x^2] - mean^2) + eps and the
    module multiplies by 1/std (einsum with the reciprocal)."""
    inv_count = 1.0 / jnp.maximum(count, 1).astype(jnp.float32)
    mean = new_sum * inv_count
    # E[x^2] - mean^2 can go slightly negative from cancellation -> clamp.
    var = jnp.maximum(new_sq * inv_count - mean * mean, 0.0)
    inv_std = pl.reciprocal(jnp.sqrt(var) + std_epsilon, approx=False)
    return mean, inv_std


# ---------------------------------------------------------------------------
# Fused single-sweep kernel (1 HBM read + 1 HBM write of x)
# ---------------------------------------------------------------------------
def _fused_kernel(std_epsilon, fold, feature_size, chunk,
                  scal_ref, x_ref, acc_sum_ref, acc_sq_ref,
                  out_ref, new_sum_ref, new_sq_ref):
    """K reduction + online-stat update + normalize for Bt batch rows.

    scal_ref : SMEM int32[3] = [prev_acc_count, do_accumulate, true_K]
    x_ref    : (Bt, Kf, Ff) lane-dense folded view of (Bt, Kp, F), native dtype
    """
    bt, kf, ff = x_ref.shape
    g, f = fold, feature_size

    do_acc = scal_ref[1]
    do_acc_f = do_acc.astype(jnp.float32)
    count = scal_ref[0] + do_acc * scal_ref[2]        # true K, not padded Kf*g

    # ---- Pass 1: node-axis reduction.  Streamed in sublane chunks so no
    # full-tile f32 upcast / x*x temporary has to live in VMEM.
    if chunk is None:
        x = x_ref[...].astype(jnp.float32)
        part_sum = jnp.sum(x, axis=1)                 # (Bt, Ff)
        part_sq = jnp.sum(x * x, axis=1)              # (Bt, Ff)
    else:
        n_chunks = kf // chunk

        def body(c, carry):
            s, q = carry
            i = pl.multiple_of(c * chunk, chunk)
            xc = x_ref[:, pl.ds(i, chunk), :].astype(jnp.float32)
            return s + jnp.sum(xc, axis=1), q + jnp.sum(xc * xc, axis=1)

        part_sum, part_sq = lax.fori_loop(
            0, n_chunks, body,
            (jnp.zeros((bt, ff), jnp.float32), jnp.zeros((bt, ff), jnp.float32)),
            unroll=n_chunks <= 8)

    data_sum = _combine_fold_groups(part_sum, g, f)   # (Bt, F)
    sq_sum = _combine_fold_groups(part_sq, g, f)

    # ---- Online statistics update (gated by the do_accumulate flag).
    new_sum = acc_sum_ref[...] + do_acc_f * data_sum
    new_sq = acc_sq_ref[...] + do_acc_f * sq_sum
    new_sum_ref[...] = new_sum
    new_sq_ref[...] = new_sq

    mean, inv_std = _stats_from_sums(new_sum, new_sq, count, std_epsilon)
    mean_b = _tile_fold_groups(mean, g)               # (Bt, Ff)
    inv_b = _tile_fold_groups(inv_std, g)

    # ---- Pass 2: normalize & store (lane-dense, unmasked vst).
    if chunk is None:
        out_ref[...] = ((x - mean_b[:, None, :]) * inv_b[:, None, :]
                        ).astype(out_ref.dtype)
    else:
        n_chunks = kf // chunk

        @pl.loop(0, n_chunks)
        def _(c):
            i = pl.multiple_of(c * chunk, chunk)
            xc = x_ref[:, pl.ds(i, chunk), :].astype(jnp.float32)
            out_ref[:, pl.ds(i, chunk), :] = (
                (xc - mean_b[:, None, :]) * inv_b[:, None, :]).astype(out_ref.dtype)


def _fused_call(xf, acc_sum, acc_sq, scalars, std_epsilon, g, f, chunk, bt,
                vmem_limit, out_dtype, cost):
    B, Kf, Ff = xf.shape
    kernel = functools.partial(_fused_kernel, float(std_epsilon), g, f, chunk)
    grid_spec = pltpu.PrefetchScalarGridSpec(
        num_scalar_prefetch=1,
        grid=(B // bt,),
        in_specs=[
            pl.BlockSpec((bt, Kf, Ff), lambda b, s: (b, 0, 0)),   # folded data
            pl.BlockSpec((bt, f), lambda b, s: (b, 0)),           # acc_sum
            pl.BlockSpec((bt, f), lambda b, s: (b, 0)),           # acc_sum_squared
        ],
        out_specs=[
            pl.BlockSpec((bt, Kf, Ff), lambda b, s: (b, 0, 0)),   # normalized
            pl.BlockSpec((bt, f), lambda b, s: (b, 0)),           # new acc_sum
            pl.BlockSpec((bt, f), lambda b, s: (b, 0)),           # new acc_sum_sq
        ],
    )
    # TODO(synk): on a 1-step grid a v7x chip uses only one of its two
    # TensorCores for this (HBM-bound) sweep; splitting along Kf requires the
    # two-phase path below (phase 2 parallelises over both axes).
    return pl.pallas_call(
        kernel,
        out_shape=(
            jax.ShapeDtypeStruct((B, Kf, Ff), out_dtype),
            jax.ShapeDtypeStruct((B, f), jnp.float32),
            jax.ShapeDtypeStruct((B, f), jnp.float32),
        ),
        grid_spec=grid_spec,
        compiler_params=pltpu.CompilerParams(
            dimension_semantics=("parallel",),
            vmem_limit_bytes=vmem_limit,
        ),
        cost_estimate=cost,
    )(scalars, xf, acc_sum, acc_sq)


# ---------------------------------------------------------------------------
# K-tiled two-phase path (row does not fit on-chip — e.g. v7x 64 MiB VMEM)
# ---------------------------------------------------------------------------
def _reduce_kernel(std_epsilon, fold, feature_size,
                   scal_ref, x_ref, acc_sum_ref, acc_sq_ref,
                   new_sum_ref, new_sq_ref, mean_f_ref, inv_f_ref,
                   sum_sc, sq_sc):
    """Phase 1: accumulate folded sums across K tiles (VMEM scratch, combined
    once), finalize new stats + folded mean / 1/std on the last K step."""
    k = pl.program_id(1)
    g, f = fold, feature_size

    @pl.when(k == 0)
    def _():
        sum_sc[...] = jnp.zeros_like(sum_sc)
        sq_sc[...] = jnp.zeros_like(sq_sc)

    x = x_ref[...].astype(jnp.float32)
    sum_sc[...] += jnp.sum(x, axis=1)
    sq_sc[...] += jnp.sum(x * x, axis=1)

    @pl.when(k == pl.num_programs(1) - 1)
    def _():
        do_acc = scal_ref[1]
        do_acc_f = do_acc.astype(jnp.float32)
        count = scal_ref[0] + do_acc * scal_ref[2]    # true K (not padded)
        data_sum = _combine_fold_groups(sum_sc[...], g, f)
        sq_sum = _combine_fold_groups(sq_sc[...], g, f)
        new_sum = acc_sum_ref[...] + do_acc_f * data_sum
        new_sq = acc_sq_ref[...] + do_acc_f * sq_sum
        new_sum_ref[...] = new_sum
        new_sq_ref[...] = new_sq
        mean, inv_std = _stats_from_sums(new_sum, new_sq, count, std_epsilon)
        mean_f_ref[...] = _tile_fold_groups(mean, g)
        inv_f_ref[...] = _tile_fold_groups(inv_std, g)


def _normalize_kernel(x_ref, mean_f_ref, inv_f_ref, out_ref):
    """Phase 2: out = (x - mean) * inv_std — a pure, fully parallel stream."""
    x = x_ref[...].astype(jnp.float32)
    out_ref[...] = ((x - mean_f_ref[...][:, None, :]) *
                    inv_f_ref[...][:, None, :]).astype(out_ref.dtype)


def _two_phase_call(xf, acc_sum, acc_sq, scalars, std_epsilon, g, f, bt, kt,
                    vmem_limit, out_dtype, cost):
    B, Kf, Ff = xf.shape
    grid = (B // bt, Kf // kt)

    # ---- Phase 1: reduction over (B, K) tiles, stats resident across K.
    reduce_kernel = functools.partial(_reduce_kernel, float(std_epsilon), g, f)
    new_sum, new_sq, mean_f, inv_f = pl.pallas_call(
        reduce_kernel,
        out_shape=(
            jax.ShapeDtypeStruct((B, f), jnp.float32),
            jax.ShapeDtypeStruct((B, f), jnp.float32),
            jax.ShapeDtypeStruct((B, Ff), jnp.float32),
            jax.ShapeDtypeStruct((B, Ff), jnp.float32),
        ),
        grid_spec=pltpu.PrefetchScalarGridSpec(
            num_scalar_prefetch=1,
            grid=grid,
            in_specs=[
                pl.BlockSpec((bt, kt, Ff), lambda b, k, s: (b, k, 0)),
                pl.BlockSpec((bt, f), lambda b, k, s: (b, 0)),
                pl.BlockSpec((bt, f), lambda b, k, s: (b, 0)),
            ],
            out_specs=[
                pl.BlockSpec((bt, f), lambda b, k, s: (b, 0)),
                pl.BlockSpec((bt, f), lambda b, k, s: (b, 0)),
                pl.BlockSpec((bt, Ff), lambda b, k, s: (b, 0)),
                pl.BlockSpec((bt, Ff), lambda b, k, s: (b, 0)),
            ],
            scratch_shapes=[pltpu.VMEM((bt, Ff), jnp.float32),
                            pltpu.VMEM((bt, Ff), jnp.float32)],
        ),
        compiler_params=pltpu.CompilerParams(
            dimension_semantics=("parallel", "arbitrary"),
            vmem_limit_bytes=vmem_limit,
        ),
    )(scalars, xf, acc_sum, acc_sq)

    # ---- Phase 2: fully parallel normalize sweep (both axes megacore-split).
    out_f = pl.pallas_call(
        _normalize_kernel,
        out_shape=jax.ShapeDtypeStruct((B, Kf, Ff), out_dtype),
        grid_spec=pl.GridSpec(
            grid=grid,
            in_specs=[
                pl.BlockSpec((bt, kt, Ff), lambda b, k: (b, k, 0)),
                pl.BlockSpec((bt, Ff), lambda b, k: (b, 0)),
                pl.BlockSpec((bt, Ff), lambda b, k: (b, 0)),
            ],
            out_specs=pl.BlockSpec((bt, kt, Ff), lambda b, k: (b, k, 0)),
        ),
        compiler_params=pltpu.CompilerParams(
            dimension_semantics=("parallel", "parallel"),
            vmem_limit_bytes=vmem_limit,
        ),
        cost_estimate=cost,
    )(xf, mean_f, inv_f)
    return out_f, new_sum, new_sq


# ---------------------------------------------------------------------------
# Public forward
# ---------------------------------------------------------------------------
def normalizer_forward(x, acc_sum, acc_sum_sq, acc_count, do_accumulate,
                       std_epsilon=_DEFAULT_STD_EPSILON, force_two_phase=False):
    """One forward pass. Returns (normalized, new_acc_sum, new_acc_sum_squared)."""
    B, K, F = x.shape
    x = jnp.asarray(x)
    if x.dtype != jnp.bfloat16:          # bf16 stays bf16 -> half the HBM traffic
        x = x.astype(jnp.float32)
    io_dtype = x.dtype
    itemsize = jnp.dtype(io_dtype).itemsize
    acc_sum = jnp.asarray(acc_sum, jnp.float32)
    acc_sum_sq = jnp.asarray(acc_sum_sq, jnp.float32)

    g = _fold_group(F)                   # (g * F) % 128 == 0
    vmem_limit = _vmem_limit_bytes()
    cap = int(vmem_limit * 0.7)
    scalars = jnp.array([acc_count, 1 if do_accumulate else 0, K], jnp.int32)
    cost = pl.CostEstimate(
        flops=int(5 * B * K * F),
        transcendentals=int(B * F),
        bytes_accessed=int(2 * B * K * F * itemsize + 6 * B * F * 4),
    )

    # ---------- fused single-sweep path ----------
    Kp = _round_up(K, g)                 # minimal zero-pad for lane-dense fold
    Kf, Ff = Kp // g, g * F
    chunk = _pick_chunk(Kf)
    tile_io = Kf * Ff * itemsize
    row_live = 4 * tile_io + (0 if chunk is not None else 3 * Kf * Ff * 4)
    Bt = None if force_two_phase else _pick_batch_tile(B, row_live, cap)

    if Bt is not None:
        if Kp != K:
            x = jnp.pad(x, ((0, 0), (0, Kp - K), (0, 0)))
        xf = x.reshape(B, Kf, Ff)
        out_f, new_sum, new_sq = _fused_call(
            xf, acc_sum, acc_sum_sq, scalars, std_epsilon, g, F, chunk, Bt,
            vmem_limit, io_dtype, cost)
    else:
        # ---------- K-tiled two-phase path ----------
        Kp = _round_up(K, _SUBLANE * g)  # Kf % 8 == 0 -> legal K tiles
        Kf = Kp // g
        if Kp != K:
            x = jnp.pad(x, ((0, 0), (0, Kp - K), (0, 0)))
        xf = x.reshape(B, Kf, Ff)
        Bt2 = _pick_batch_tile_two_phase(B)
        live_per_krow = Bt2 * Ff * (4 * itemsize + 3 * 4)
        Kt = _pick_k_tile(Kf, live_per_krow, cap)
        out_f, new_sum, new_sq = _two_phase_call(
            xf, acc_sum, acc_sum_sq, scalars, std_epsilon, g, F, Bt2, Kt,
            vmem_limit, io_dtype, cost)

    out = out_f.reshape(B, Kp, F)
    if Kp != K:
        out = out[:, :K, :]              # drop the zero-padded node rows
    return out, new_sum, new_sq


class NormalizerPallas:
    """JAX/Pallas port of the PyTorch Normalizer (forward path)."""

    def __init__(self, batch_size, feature_size, name="normalizer",
                 max_accumulations=10 ** 6, std_epsilon=1e-8):
        self._name = name
        self._max_accumulations = max_accumulations
        self._std_epsilon = float(std_epsilon)
        self._acc_count = 0
        self._num_accumulations = 0
        self._acc_sum = jnp.zeros((batch_size, feature_size), dtype=jnp.float32)
        self._acc_sum_squared = jnp.zeros((batch_size, feature_size), dtype=jnp.float32)

    def forward(self, batched_data, accumulate=True):
        do_acc = accumulate and self._num_accumulations < self._max_accumulations
        out, new_sum, new_sq = normalizer_forward(
            batched_data, self._acc_sum, self._acc_sum_squared,
            self._acc_count, do_acc, self._std_epsilon)
        if do_acc:
            self._acc_sum = new_sum
            self._acc_sum_squared = new_sq
            self._acc_count += batched_data.shape[1]
            self._num_accumulations += 1
        return out

    # TODO(synk): inverse() (de-normalization) not implemented — forward only.

    def get_acc_sum(self):
        return self._acc_sum


# ---------------------------------------------------------------------------
# Reference + self-test
# ---------------------------------------------------------------------------
def _reference_forward(x, acc_sum, acc_sq, acc_count, accumulate=True,
                       std_epsilon=_DEFAULT_STD_EPSILON):
    """Pure-numpy reference mirroring the PyTorch module."""
    x = np.asarray(x, dtype=np.float32)
    acc_sum = np.asarray(acc_sum, dtype=np.float32).copy()
    acc_sq = np.asarray(acc_sq, dtype=np.float32).copy()
    if accumulate:
        acc_sum += x.sum(axis=1)
        acc_sq += (x ** 2).sum(axis=1)
        acc_count += x.shape[1]
    safe = max(acc_count, 1)
    mean = acc_sum / safe
    var = np.maximum(acc_sq / safe - mean ** 2, 0.0)
    std = np.sqrt(var) + std_epsilon
    return (x - mean[:, None, :]) / std[:, None, :], acc_sum, acc_sq, acc_count


if __name__ == "__main__":
    B, K, F = 2, 8, 32   # batch_size=2, nodes(seq)=8, feature_size=32
    key = jax.random.PRNGKey(0)
    x1 = jax.random.normal(key, (B, K, F), dtype=jnp.float32)
    x2 = jax.random.normal(jax.random.fold_in(key, 1), (B, K, F),
                           dtype=jnp.float32) * 2.0 + 0.5

    # ---- Module-style usage (fused path), online stats across 3 calls ----
    norm = NormalizerPallas(batch_size=B, feature_size=F, name="test_norm")
    out1 = jax.block_until_ready(norm.forward(x1, accumulate=True))
    out2 = jax.block_until_ready(norm.forward(x2, accumulate=True))
    out3 = jax.block_until_ready(norm.forward(x1, accumulate=False))

    ref1, rs, rq, rc = _reference_forward(x1, np.zeros((B, F)), np.zeros((B, F)), 0, True)
    ref2, rs, rq, rc = _reference_forward(x2, rs, rq, rc, True)
    ref3, _, _, _ = _reference_forward(x1, rs, rq, rc, False)
    np.testing.assert_allclose(np.asarray(out1), ref1, rtol=1e-5, atol=1e-5)
    np.testing.assert_allclose(np.asarray(out2), ref2, rtol=1e-5, atol=1e-5)
    np.testing.assert_allclose(np.asarray(out3), ref3, rtol=1e-5, atol=1e-5)
    np.testing.assert_allclose(np.asarray(norm.get_acc_sum()), rs, rtol=1e-5, atol=1e-5)

    # ---- K-tiled two-phase path (forced): same math, different tiling ----
    out_tp, ts, tq = normalizer_forward(
        x1, jnp.zeros((B, F)), jnp.zeros((B, F)), 0, True, force_two_phase=True)
    jax.block_until_ready(out_tp)
    np.testing.assert_allclose(np.asarray(out_tp), ref1, rtol=1e-5, atol=1e-5)
    np.testing.assert_allclose(np.asarray(ts),
                               np.asarray(x1).sum(axis=1), rtol=1e-5, atol=1e-5)

    # ---- Native bf16 I/O path (halved HBM traffic) ----
    x1_bf = x1.astype(jnp.bfloat16)
    out_bf, bs, bq = normalizer_forward(
        x1_bf, jnp.zeros((B, F)), jnp.zeros((B, F)), 0, True)
    jax.block_until_ready(out_bf)
    ref_bf, rbs, _, _ = _reference_forward(
        np.asarray(x1_bf.astype(jnp.float32)), np.zeros((B, F)), np.zeros((B, F)), 0, True)
    np.testing.assert_allclose(np.asarray(out_bf.astype(jnp.float32)), ref_bf,
                               rtol=3e-2, atol=3e-2)
    np.testing.assert_allclose(np.asarray(bs), rbs, rtol=1e-5, atol=1e-5)

    # ---- Larger K exercising the chunked in-kernel reduction ----
    x4 = jax.random.normal(jax.random.fold_in(key, 2), (B, 256, F), dtype=jnp.float32)
    out4, s4, q4 = normalizer_forward(x4, jnp.zeros((B, F)), jnp.zeros((B, F)), 0, True)
    jax.block_until_ready(out4)
    ref4, _, _, _ = _reference_forward(x4, np.zeros((B, F)), np.zeros((B, F)), 0, True)
    np.testing.assert_allclose(np.asarray(out4), ref4, rtol=1e-4, atol=1e-4)

    print("KERNEL_OK")
</pallas_src>

<mosaic_0001>
module attributes {stable_mosaic.version = 11 : i64} {
  func.func @_fused_kernel(%arg0: i32, %arg1: memref<3xi32, #tpu.memory_space<smem>>, %arg2: memref<2x2x128xf32, #tpu.memory_space<vmem>>, %arg3: memref<2x32xf32, #tpu.memory_space<vmem>>, %arg4: memref<2x32xf32, #tpu.memory_space<vmem>>, %arg5: memref<2x2x128xf32, #tpu.memory_space<vmem>>, %arg6: memref<2x32xf32, #tpu.memory_space<vmem>>, %arg7: memref<2x32xf32, #tpu.memory_space<vmem>>) attributes {dimension_semantics = [#tpu.dimension_semantics<parallel>], iteration_bounds = array<i64: 1>, scalar_prefetch = 1 : i64, scratch_operands = 0 : i64, tpu.core_type = #tpu.core_type<tc>, window_params = [{transform_indices = @transform_0, window_bounds = array<i64: 2, 2, 128>}, {transform_indices = @transform_1, window_bounds = array<i64: 2, 32>}, {transform_indices = @transform_2, window_bounds = array<i64: 2, 32>}, {transform_indices = @transform_3, window_bounds = array<i64: 2, 2, 128>}, {transform_indices = @transform_4, window_bounds = array<i64: 2, 32>}, {transform_indices = @transform_5, window_bounds = array<i64: 2, 32>}]} {
    %c1 = arith.constant 1 : index
    %0 = memref.load %arg1[%c1] : memref<3xi32, #tpu.memory_space<smem>>
    %1 = arith.sitofp %0 : i32 to f32
    %c0 = arith.constant 0 : index
    %2 = memref.load %arg1[%c0] : memref<3xi32, #tpu.memory_space<smem>>
    %c2 = arith.constant 2 : index
    %3 = memref.load %arg1[%c2] : memref<3xi32, #tpu.memory_space<smem>>
    %4 = arith.muli %0, %3 : i32
    %5 = arith.addi %2, %4 : i32
    %c0_0 = arith.constant 0 : index
    %c0_1 = arith.constant 0 : index
    %c0_2 = arith.constant 0 : index
    %6 = vector.load %arg2[%c0_0, %c0_1, %c0_2] : memref<2x2x128xf32, #tpu.memory_space<vmem>>, vector<2x2x128xf32>
    %cst = arith.constant dense<0.000000e+00> : vector<2x128xf32>
    %7 = vector.multi_reduction <add>, %6, %cst [1] : vector<2x2x128xf32> to vector<2x128xf32>
    %8 = arith.mulf %6, %6 : vector<2x2x128xf32>
    %cst_3 = arith.constant dense<0.000000e+00> : vector<2x128xf32>
    %9 = vector.multi_reduction <add>, %8, %cst_3 [1] : vector<2x2x128xf32> to vector<2x128xf32>
    %10 = vector.extract_strided_slice %7 {offsets = [0, 0], sizes = [2, 32], strides = [1, 1]} : vector<2x128xf32> to vector<2x32xf32>
    %11 = vector.extract_strided_slice %7 {offsets = [0, 32], sizes = [2, 32], strides = [1, 1]} : vector<2x128xf32> to vector<2x32xf32>
    %12 = arith.addf %10, %11 : vector<2x32xf32>
    %13 = vector.extract_strided_slice %7 {offsets = [0, 64], sizes = [2, 32], strides = [1, 1]} : vector<2x128xf32> to vector<2x32xf32>
    %14 = arith.addf %12, %13 : vector<2x32xf32>
    %15 = vector.extract_strided_slice %7 {offsets = [0, 96], sizes = [2, 32], strides = [1, 1]} : vector<2x128xf32> to vector<2x32xf32>
    %16 = arith.addf %14, %15 : vector<2x32xf32>
    %17 = vector.extract_strided_slice %9 {offsets = [0, 0], sizes = [2, 32], strides = [1, 1]} : vector<2x128xf32> to vector<2x32xf32>
    %18 = vector.extract_strided_slice %9 {offsets = [0, 32], sizes = [2, 32], strides = [1, 1]} : vector<2x128xf32> to vector<2x32xf32>
    %19 = arith.addf %17, %18 : vector<2x32xf32>
    %20 = vector.extract_strided_slice %9 {offsets = [0, 64], sizes = [2, 32], strides = [1, 1]} : vector<2x128xf32> to vector<2x32xf32>
    %21 = arith.addf %19, %20 : vector<2x32xf32>
    %22 = vector.extract_strided_slice %9 {offsets = [0, 96], sizes = [2, 32], strides = [1, 1]} : vector<2x128xf32> to vector<2x32xf32>
    %23 = arith.addf %21, %22 : vector<2x32xf32>
    %c0_4 = arith.constant 0 : index
    %c0_5 = arith.constant 0 : index
    %24 = vector.load %arg3[%c0_4, %c0_5] : memref<2x32xf32, #tpu.memory_space<vmem>>, vector<2x32xf32>
    %25 = vector.broadcast %1 : f32 to vector<2x32xf32>
    %26 = arith.mulf %25, %16 : vector<2x32xf32>
    %27 = arith.addf %24, %26 : vector<2x32xf32>
    %c0_6 = arith.constant 0 : index
    %c0_7 = arith.constant 0 : index
    %28 = vector.load %arg4[%c0_6, %c0_7] : memref<2x32xf32, #tpu.memory_space<vmem>>, vector<2x32xf32>
    %29 = vector.broadcast %1 : f32 to vector<2x32xf32>
    %30 = arith.mulf %29, %23 : vector<2x32xf32>
    %31 = arith.addf %28, %30 : vector<2x32xf32>
    %c0_8 = arith.constant 0 : index
    %c0_9 = arith.constant 0 : index
    %32 = vector.load %arg6[%c0_8, %c0_9] : memref<2x32xf32, #tpu.memory_space<vmem>>, vector<2x32xf32>
    tpu.vector_store %arg6[%c0_8, %c0_9], %27 {strides = array<i32>} : memref<2x32xf32, #tpu.memory_space<vmem>>, vector<2x32xf32>,
    %c0_10 = arith.constant 0 : index
    %c0_11 = arith.constant 0 : index
    %33 = vector.load %arg7[%c0_10, %c0_11] : memref<2x32xf32, #tpu.memory_space<vmem>>, vector<2x32xf32>
    tpu.vector_store %arg7[%c0_10, %c0_11], %31 {strides = array<i32>} : memref<2x32xf32, #tpu.memory_space<vmem>>, vector<2x32xf32>,
    %c1_i32 = arith.constant 1 : i32
    %34 = arith.maxsi %5, %c1_i32 : i32
    %35 = arith.sitofp %34 : i32 to f32
    %cst_12 = arith.constant 1.000000e+00 : f32
    %36 = arith.divf %cst_12, %35 : f32
    %37 = vector.broadcast %36 : f32 to vector<2x32xf32>
    %38 = arith.mulf %27, %37 : vector<2x32xf32>
    %39 = vector.broadcast %36 : f32 to vector<2x32xf32>
    %40 = arith.mulf %31, %39 : vector<2x32xf32>
    %41 = arith.mulf %38, %38 : vector<2x32xf32>
    %42 = arith.subf %40, %41 : vector<2x32xf32>
    %cst_13 = arith.constant 0.000000e+00 : f32
    %43 = vector.broadcast %cst_13 : f32 to vector<2x32xf32>
    %44 = arith.maximumf %42, %43 : vector<2x32xf32>
    %45 = math.sqrt %44 : vector<2x32xf32>
    %cst_14 = arith.constant 9.99999993E-9 : f32
    %46 = vector.broadcast %cst_14 : f32 to vector<2x32xf32>
    %47 = arith.addf %45, %46 : vector<2x32xf32>
    %48 = tpu.reciprocal %47 : vector<2x32xf32> -> vector<2x32xf32>
    %49 = tpu.concatenate %38, %38, %38, %38 in 1 : vector<2x32xf32>, vector<2x32xf32>, vector<2x32xf32>, vector<2x32xf32> -> vector<2x128xf32>
    %50 = tpu.concatenate %48, %48, %48, %48 in 1 : vector<2x32xf32>, vector<2x32xf32>, vector<2x32xf32>, vector<2x32xf32> -> vector<2x128xf32>
    %51 = vector.shape_cast %49 : vector<2x128xf32> to vector<2x1x128xf32>
    %52 = vector.broadcast %51 : vector<2x1x128xf32> to vector<2x2x128xf32>
    %53 = arith.subf %6, %52 : vector<2x2x128xf32>
    %54 = vector.shape_cast %50 : vector<2x128xf32> to vector<2x1x128xf32>
    %55 = vector.broadcast %54 : vector<2x1x128xf32> to vector<2x2x128xf32>
    %56 = arith.mulf %53, %55 : vector<2x2x128xf32>
    %c0_15 = arith.constant 0 : index
    %c0_16 = arith.constant 0 : index
    %c0_17 = arith.constant 0 : index
    %57 = vector.load %arg5[%c0_15, %c0_16, %c0_17] : memref<2x2x128xf32, #tpu.memory_space<vmem>>, vector<2x2x128xf32>
    tpu.vector_store %arg5[%c0_15, %c0_16, %c0_17], %56 {strides = array<i32>} : memref<2x2x128xf32, #tpu.memory_space<vmem>>, vector<2x2x128xf32>,
    return
  }
  func.func @transform_0(%arg0: i32, %arg1: memref<3xi32, #tpu.memory_space<smem>>) -> (i32, i32, i32) {
    %c0_i32 = arith.constant 0 : i32
    %c0_i32_0 = arith.constant 0 : i32
    %c0_i32_1 = arith.constant 0 : i32
    return %arg0, %c0_i32, %c0_i32_0 : i32, i32, i32
  }
  func.func @transform_1(%arg0: i32, %arg1: memref<3xi32, #tpu.memory_space<smem>>) -> (i32, i32) {
    %c0_i32 = arith.constant 0 : i32
    %c0_i32_0 = arith.constant 0 : i32
    return %arg0, %c0_i32 : i32, i32
  }
  func.func @transform_2(%arg0: i32, %arg1: memref<3xi32, #tpu.memory_space<smem>>) -> (i32, i32) {
    %c0_i32 = arith.constant 0 : i32
    %c0_i32_0 = arith.constant 0 : i32
    return %arg0, %c0_i32 : i32, i32
  }
  func.func @transform_3(%arg0: i32, %arg1: memref<3xi32, #tpu.memory_space<smem>>) -> (i32, i32, i32) {
    %c0_i32 = arith.constant 0 : i32
    %c0_i32_0 = arith.constant 0 : i32
    %c0_i32_1 = arith.constant 0 : i32
    return %arg0, %c0_i32, %c0_i32_0 : i32, i32, i32
  }
  func.func @transform_4(%arg0: i32, %arg1: memref<3xi32, #tpu.memory_space<smem>>) -> (i32, i32) {
    %c0_i32 = arith.constant 0 : i32
    %c0_i32_0 = arith.constant 0 : i32
    return %arg0, %c0_i32 : i32, i32
  }
  func.func @transform_5(%arg0: i32, %arg1: memref<3xi32, #tpu.memory_space<smem>>) -> (i32, i32) {
    %c0_i32 = arith.constant 0 : i32
    %c0_i32_0 = arith.constant 0 : i32
    return %arg0, %c0_i32 : i32, i32
  }
}

</mosaic_0001>

<llo_original>
// kernel: tpu_custom_call.1
$region0: #{tpu_custom_call.1}
  #allocation0 [shape = 'u32[]', space=smem, size = 0x4, offset = 0x4, fixed_abs, tag = 'smem constant byte address 0x4 - core index']
  #allocation1 [shape = 'u32[144,128]{1,0:T(1,128)}', space=vmem, size = 0x12000, scoped, tag = 'internal scratch']
  #allocation2 [shape = 's32[1]{0}', space=sflag, size = 0x4, scoped, tag = 'scoped memory for tpu_custom_call.1']
  #allocation3 [shape = 'u8[512]{0}', space=smem, size = 0x200, scoped, tag = 'prefetched SMEM operand 0']
  %s0 = inlined_call_operand.hbm [shape: s32[3], index: 0, kind: input, shape index: {}]
  %s1 = inlined_call_operand.hbm [shape: f32[2,2,128], index: 1, kind: input, shape index: {}]
  %s2 = inlined_call_operand.vmem [shape: f32[2,32], index: 2, kind: input, shape index: {}]
  %s3 = inlined_call_operand.vmem [shape: f32[2,32], index: 3, kind: input, shape index: {}]
  %s4 = inlined_call_operand.hbm [shape: f32[2,2,128], index: 4, kind: output, shape index: {0}]
  %s5 = inlined_call_operand.hbm [shape: f32[2,32], index: 5, kind: output, shape index: {1}]
  %s6 = inlined_call_operand.hbm [shape: f32[2,32], index: 6, kind: output, shape index: {2}]
  %7 = xla_tuple %s4, %s5, %s6
  %s8 = sld [smem:[#allocation0]]
  $region42: #{tpu_custom_call.1} parent=0
    _
  %s10 = ssub.s32 1, %s8
  %s11 = scalar_select 0, %s10, %s8
  %13 = dma.hbm_to_smem %s0, 16, [#allocation3], [#allocation2]
  %14 = dma.done [#allocation2], 16
  %15 = sfence
  $region1: #{tpu_custom_call.1} parent=0
    #allocation4 [shape = 'u8[2048]{0}', space=vmem, size = 0x800, scoped, tag = 'input window, operand 1, single buffered']
    #allocation5 [shape = 's32[1]{0}', space=sflag, size = 0x4, scoped, tag = 'scoped memory for tpu_custom_call.1']
    #allocation6 [shape = 's32[1]{0}', space=sflag, size = 0x4, scoped, tag = 'scoped memory for tpu_custom_call.1']
    #allocation7 [shape = 'u8[2048]{0}', space=vmem, size = 0x800, scoped, tag = 'output window, operand 0, single buffered']
    #allocation8 [shape = 'u8[1024]{0}', space=vmem, size = 0x400, scoped, tag = 'output window, operand 1, single buffered']
    #allocation9 [shape = 's32[1]{0}', space=sflag, size = 0x4, scoped, tag = 'scoped memory for tpu_custom_call.1']
    #allocation10 [shape = 'u8[1024]{0}', space=vmem, size = 0x400, scoped, tag = 'output window, operand 2, single buffered']
    %16 = vsyncpa [#allocation5], 0
    %17 = vsyncpa [#allocation6], 0
    %18 = vsyncpa [#allocation9], 0
    // Predicated region
    $region2: #{tpu_custom_call.1} parent=1 // pred_check
      _
    $region3: #{tpu_custom_call.1} parent=1 // pred_check_branch
      %20 = sbr.rel (0) target = $region5
    $region4: #{tpu_custom_call.1} parent=1 // pred_region
      %s22 = ssub.s32 64, 64
      %23 = vsyncadd [#allocation5], %s22
      %s24 = sshll.u32 [#allocation4], 4
      %s25 = int_to_ptr.vmem [resolvable:$true] %s24
      %30 = dma.hbm_to_vmem [thread:$0]  %s1, 64, %s25, [#allocation5], 32, 32, 2
    $region5: #{tpu_custom_call.1} parent=1 // pred_fallthru
      _
    // Predicated region
    $region6: #{tpu_custom_call.1} parent=1 // pred_check
      _
    $region7: #{tpu_custom_call.1} parent=1 // pred_check_branch
      %32 = sbr.rel (0) target = $region9
    $region8: #{tpu_custom_call.1} parent=1 // pred_region
      _
    $region9: #{tpu_custom_call.1} parent=1 // pred_fallthru
      _
    // Predicated region
    $region10: #{tpu_custom_call.1} parent=1 // pred_check
      _
    $region11: #{tpu_custom_call.1} parent=1 // pred_check_branch
      %34 = sbr.rel (0) target = $region13
    $region12: #{tpu_custom_call.1} parent=1 // pred_region
      _
    $region13: #{tpu_custom_call.1} parent=1 // pred_fallthru
      _
    // Predicated region
    $region14: #{tpu_custom_call.1} parent=1 // pred_check
      _
    $region15: #{tpu_custom_call.1} parent=1 // pred_check_branch
      %36 = sbr.rel (0) target = $region17
    $region16: #{tpu_custom_call.1} parent=1 // pred_region
      %37 = dma.done [#allocation5], 64
    $region17: #{tpu_custom_call.1} parent=1 // pred_fallthru
      _
    %s38 = sld [smem:[#allocation3 + $0x1]]
    %s39 = scvt.s32.f32 %s38
    %s40 = sld [smem:[#allocation3]]
    %s41 = sld [smem:[#allocation3 + $0x2]]
    %s42 = smul.u32 %s38, %s41
    %s43 = sadd.s32 %s40, %s42
    %v44 = vld [vmem:[#allocation4] sm:$0x3]
    %v45 = vld [vmem:[#allocation4 + $0x2] sm:$0x3]
    %vm46 = vcmask 1041408
    %v47 = vsel %vm46, %v44, 0.0
    %v48 = vrot.slane %v47, 4
    %v49 = vadd.f32 %v47, %v48
    %v50 = vrot.slane %v49, 2
    %v51 = vadd.f32 %v49, %v50
    %v52 = vrot.slane %v51, 1
    %v53 = vadd.f32 %v51, %v52
    %v54 = vsel %vm46, %v45, 0.0
    %v55 = vrot.slane %v54, 4
    %v56 = vadd.f32 %v54, %v55
    %v57 = vrot.slane %v56, 2
    %v58 = vadd.f32 %v56, %v57
    %v59 = vrot.slane %v58, 1
    %v60 = vadd.f32 %v58, %v59
    %v61 = vmul.f32 %v44, %v44
    %v62 = vmul.f32 %v45, %v45
    %v63 = vsel %vm46, %v61, 0.0
    %v64 = vrot.slane %v63, 4
    %v65 = vadd.f32 %v63, %v64
    %v66 = vrot.slane %v65, 2
    %v67 = vadd.f32 %v65, %v66
    %v68 = vrot.slane %v67, 1
    %v69 = vadd.f32 %v67, %v68
    %v70 = vsel %vm46, %v62, 0.0
    %v71 = vrot.slane %v70, 4
    %v72 = vadd.f32 %v70, %v71
    %v73 = vrot.slane %v72, 2
    %v74 = vadd.f32 %v72, %v73
    %v75 = vrot.slane %v74, 1
    %v76 = vadd.f32 %v74, %v75
    %79 = vrot.lane.b32.xlu0 %v53, 96
    %v80 = vpop.permute.xlu0 %79
    %81 = vrot.lane.b32.xlu0 %v60, 96
    %v82 = vpop.permute.xlu0 %81
    %v85 = vadd.f32 %v53, %v80
    %v86 = vadd.f32 %v60, %v82
    %87 = vrot.lane.b32.xlu0 %v53, 64
    %v88 = vpop.permute.xlu0 %87
    %89 = vrot.lane.b32.xlu0 %v60, 64
    %v90 = vpop.permute.xlu0 %89
    %v93 = vadd.f32 %v85, %v88
    %v94 = vadd.f32 %v86, %v90
    %95 = vrot.lane.b32.xlu0 %v53, 32
    %v96 = vpop.permute.xlu0 %95
    %97 = vrot.lane.b32.xlu0 %v60, 32
    %v98 = vpop.permute.xlu0 %97
    %v101 = vadd.f32 %v93, %v96
    %v102 = vadd.f32 %v94, %v98
    %105 = vrot.lane.b32.xlu0 %v69, 96
    %v106 = vpop.permute.xlu0 %105
    %107 = vrot.lane.b32.xlu0 %v76, 96
    %v108 = vpop.permute.xlu0 %107
    %v111 = vadd.f32 %v69, %v106
    %v112 = vadd.f32 %v76, %v108
    %113 = vrot.lane.b32.xlu0 %v69, 64
    %v114 = vpop.permute.xlu0 %113
    %115 = vrot.lane.b32.xlu0 %v76, 64
    %v116 = vpop.permute.xlu0 %115
    %v119 = vadd.f32 %v111, %v114
    %v120 = vadd.f32 %v112, %v116
    %121 = vrot.lane.b32.xlu0 %v69, 32
    %v122 = vpop.permute.xlu0 %121
    %123 = vrot.lane.b32.xlu0 %v76, 32
    %v124 = vpop.permute.xlu0 %123
    %v127 = vadd.f32 %v119, %v122
    %v128 = vadd.f32 %v120, %v124
    %v129 = vld [vmem:[%s2] sm:$0x3]
    %v130 = vstv %s39
    %v131 = vmul.f32 %v130, %v101
    %v132 = vmul.f32 %v130, %v102
    %v135 = vrot.slane %v132, 7
    %vm136 = vcmask 1041409
    %v137 = vsel %vm136, %v135, %v131
    %v139 = vadd.f32 %v129, %v137
    %v140 = vld [vmem:[%s3] sm:$0x3]
    %v141 = vmul.f32 %v130, %v127
    %v142 = vmul.f32 %v130, %v128
    %v145 = vrot.slane %v142, 7
    %v146 = vsel %vm136, %v145, %v141
    %v148 = vadd.f32 %v140, %v146
    %vm149 = vcmask 254976
    %150 = vst.msk [vmem:[#allocation8] sm:$0x3] %vm149, %v139
    %151 = vst.msk [vmem:[#allocation10] sm:$0x3] %vm149, %v148
    %p152 = scmp.gt.s32.totalorder %s43, 1
    %s153 = scalar_select %p152, %s43, 1
    %s154 = scvt.s32.f32 %s153
    %v155 = vstv %s154
    %v156 = vrcp.pop %v155
    %s157 = vtos %v156
    %v158 = vstv %s157
    %v159 = vmul.f32 %v139, %v158
    %v160 = vmul.f32 %v148, %v158
    %v161 = vmul.f32 %v159, %v159
    %v162 = vsub.f32 %v160, %v161
    %v163 = vmax.f32 %v162, 0.0
    %v164 = vrsqrt.pop %v163
    %v165 = vmul.f32 %v163, %v164
    %vm166 = vcmp.eq.f32.partialorder %v163, inf
    %v167 = vsel %vm166, %v163, %v165
    %vm168 = vcmp.eq.f32.partialorder %v163, 0.0
    %v169 = vand.u32 %v163, 2147483648
    %v170 = vsel %vm168, %v169, %v167
    %v171 = vadd.f32 %v170, 1e-08
    %v172 = vrcp.pop %v171
    %174 = vrot.lane.b32.xlu0 %v159, 32
    %v175 = vpop.permute.xlu0 %174
    %177 = vrot.lane.b32.xlu0 %v159, 64
    %v178 = vpop.permute.xlu0 %177
    %180 = vrot.lane.b32.xlu0 %v159, 96
    %v181 = vpop.permute.xlu0 %180
    %vm183 = vcmask 261120
    %v184 = vsel %vm183, %v159, %v175
    %vm185 = vcmask 523264
    %v186 = vsel %vm185, %v184, %v178
    %vm187 = vcmask 785408
    %v188 = vsel %vm187, %v186, %v181
    %190 = vrot.lane.b32.xlu0 %v172, 32
    %v191 = vpop.permute.xlu0 %190
    %193 = vrot.lane.b32.xlu0 %v172, 64
    %v194 = vpop.permute.xlu0 %193
    %196 = vrot.lane.b32.xlu0 %v172, 96
    %v197 = vpop.permute.xlu0 %196
    %v199 = vsel %vm183, %v172, %v191
    %v200 = vsel %vm185, %v199, %v194
    %v201 = vsel %vm187, %v200, %v197
    %v204 = vunpack.c.l.s4 1966171168
    %v205 = vunpack.c.0.s8 %v204
    %v206 = vlaneseq
    %v207 = vshrl.u32 %v206, 7
    %v208 = vsub.s32 %v205, %v207
    %v209 = vrot.slane %v188, %v208
    %v210 = vcombine.high %v209, %v209
    %v212 = vunpack.c.l.s4 1966171168
    %v213 = vunpack.c.0.s8 %v212
    %v214 = vlaneseq
    %v215 = vshrl.u32 %v214, 7
    %v216 = vsub.s32 %v213, %v215
    %v217 = vrot.slane %v209, %v216
    %v219 = vunpack.c.l.s4 1966171168
    %v220 = vunpack.c.0.s8 %v219
    %v221 = vlaneseq
    %v222 = vshrl.u32 %v221, 7
    %v223 = vsub.s32 %v220, %v222
    %v224 = vrot.slane %v210, %v223
    %v225 = vlaneseq
    %v226 = vshrl.u32 %v225, 7
    %v227 = vsub.s32 0, %v226
    %v228 = vrot.slane %v217, %v227
    %v229 = vlaneseq
    %v230 = vshrl.u32 %v229, 7
    %v231 = vsub.s32 0, %v230
    %v232 = vrot.slane %v224, %v231
    %v235 = vsub.f32 %v44, %v228
    %v236 = vsub.f32 %v45, %v232
    %v239 = vunpack.c.l.s4 1966171168
    %v240 = vunpack.c.0.s8 %v239
    %v241 = vlaneseq
    %v242 = vshrl.u32 %v241, 7
    %v243 = vsub.s32 %v240, %v242
    %v244 = vrot.slane %v201, %v243
    %v245 = vcombine.high %v244, %v244
    %v247 = vunpack.c.l.s4 1966171168
    %v248 = vunpack.c.0.s8 %v247
    %v249 = vlaneseq
    %v250 = vshrl.u32 %v249, 7
    %v251 = vsub.s32 %v248, %v250
    %v252 = vrot.slane %v244, %v251
    %v254 = vunpack.c.l.s4 1966171168
    %v255 = vunpack.c.0.s8 %v254
    %v256 = vlaneseq
    %v257 = vshrl.u32 %v256, 7
    %v258 = vsub.s32 %v255, %v257
    %v259 = vrot.slane %v245, %v258
    %v260 = vlaneseq
    %v261 = vshrl.u32 %v260, 7
    %v262 = vsub.s32 0, %v261
    %v263 = vrot.slane %v252, %v262
    %v264 = vlaneseq
    %v265 = vshrl.u32 %v264, 7
    %v266 = vsub.s32 0, %v265
    %v267 = vrot.slane %v259, %v266
    %v270 = vmul.f32 %v235, %v263
    %v271 = vmul.f32 %v236, %v267
    %272 = vst [vmem:[#allocation7] sm:$0x3] %v270
    %273 = vst [vmem:[#allocation7 + $0x2] sm:$0x3] %v271
    // Predicated region
    $region18: #{tpu_custom_call.1} parent=1 // pred_check
      _
    $region19: #{tpu_custom_call.1} parent=1 // pred_check_branch
      %275 = sbr.rel (0) target = $region21
    $region20: #{tpu_custom_call.1} parent=1 // pred_region
      %s277 = ssub.s32 64, 64
      %278 = vsyncadd [#allocation6], %s277
      %s279 = sshll.u32 [#allocation7], 4
      %s280 = int_to_ptr.vmem [resolvable:$true] %s279
      %285 = dma.vmem_to_hbm [thread:$0]  %s280, 64, %s4, [#allocation6], 32, 32, 2
    $region21: #{tpu_custom_call.1} parent=1 // pred_fallthru
      _
    // Predicated region
    $region22: #{tpu_custom_call.1} parent=1 // pred_check
      _
    $region23: #{tpu_custom_call.1} parent=1 // pred_check_branch
      %287 = sbr.rel (0) target = $region25
    $region24: #{tpu_custom_call.1} parent=1 // pred_region
      %s289 = ssub.s32 32, 32
      %290 = vsyncadd [#allocation9], %s289
      %s292 = sshll.u32 [#allocation8], 4
      %s293 = int_to_ptr.vmem [resolvable:$true] %s292
      %295 = dma.vmem_to_hbm [thread:$0]  %s293, 32, %s5, [#allocation9]
    $region25: #{tpu_custom_call.1} parent=1 // pred_fallthru
      _
    // Predicated region
    $region26: #{tpu_custom_call.1} parent=1 // pred_check
      _
    $region27: #{tpu_custom_call.1} parent=1 // pred_check_branch
      %297 = sbr.rel (0) target = $region29
    $region28: #{tpu_custom_call.1} parent=1 // pred_region
      %s299 = ssub.s32 32, 32
      %300 = vsyncadd [#allocation9], %s299
      %s302 = sshll.u32 [#allocation10], 4
      %s303 = int_to_ptr.vmem [resolvable:$true] %s302
      %305 = dma.vmem_to_hbm [thread:$0]  %s303, 32, %s6, [#allocation9]
    $region29: #{tpu_custom_call.1} parent=1 // pred_fallthru
      _
    // Predicated region
    $region30: #{tpu_custom_call.1} parent=1 // pred_check
      _
    $region31: #{tpu_custom_call.1} parent=1 // pred_check_branch
      %307 = sbr.rel (0) target = $region33
    $region32: #{tpu_custom_call.1} parent=1 // pred_region
      %308 = dma.done [#allocation6], 64
    $region33: #{tpu_custom_call.1} parent=1 // pred_fallthru
      _
    // Predicated region
    $region34: #{tpu_custom_call.1} parent=1 // pred_check
      _
    $region35: #{tpu_custom_call.1} parent=1 // pred_check_branch
      %310 = sbr.rel (0) target = $region37
    $region36: #{tpu_custom_call.1} parent=1 // pred_region
      %311 = dma.done [#allocation9], 32
    $region37: #{tpu_custom_call.1} parent=1 // pred_fallthru
      _
    // Predicated region
    $region38: #{tpu_custom_call.1} parent=1 // pred_check
      _
    $region39: #{tpu_custom_call.1} parent=1 // pred_check_branch
      %313 = sbr.rel (0) target = $region41
    $region40: #{tpu_custom_call.1} parent=1 // pred_region
      %314 = dma.done [#allocation9], 32
    $region41: #{tpu_custom_call.1} parent=1 // pred_fallthru
      _
    %315 = vsyncpa [#allocation5], 1
    %316 = vsyncpa [#allocation6], 1
    %317 = vsyncpa [#allocation9], 1

</llo_original>
